<compile_context>
chip_gen: v7x
topology: tpu7x:2x2x1
jax: 0.10.0
libtpu: 0.0.40
codegen_flags: <defaults>
</compile_context>

<pallas_src>
import functools

import jax
import jax.numpy as jnp
from jax import lax
from jax.experimental import pallas as pl
from jax.experimental.pallas import tpu as pltpu


def _round_up(x, m):
    return ((x + m - 1) // m) * m


# Multiples of 256: v6e/v7x MXU is 2x256x256 (128-multiples are enough for v5e).
_H_TILE_CANDIDATES = (512, 256)
_K_TILE_CANDIDATES = (2048, 1024, 512, 256)


def _pick_h_tile(h):
    pads = [(_round_up(h, t) - h, t) for t in _H_TILE_CANDIDATES]
    min_pad = min(p for p, _ in pads)
    cands = [t for p, t in pads if p == min_pad]
    # Prefer the largest minimal-padding tile that still yields >= 2 H tiles,
    # so the "parallel" H axis can split across v7x's two TensorCores.
    multi = [t for t in cands if _round_up(h, t) // t >= 2]
    t = max(multi) if multi else min(cands)
    return _round_up(h, t), t


def _pick_k_tile(f):
    pads = [(_round_up(f, t) - f, t) for t in _K_TILE_CANDIDATES]
    min_pad = min(p for p, _ in pads)
    t = max(t for p, t in pads if p == min_pad)   # biggest tile, least padding
    return _round_up(f, t), t


def _first_linear_kernel(x_ref, w_ref, b_ref, o_ref, *, inv_batch):
    """Grid = (H_tiles, K_tiles).  Blocks:
         x: (B, tK)   W^T: (tK, tH)   bias: (1, tH)   out: (B, tH).
    The output block index depends only on the H-tile index, so it stays
    resident in VMEM across the K axis and doubles as the accumulator."""
    k = pl.program_id(1)

    # bf16 (or f32) MXU inputs, f32 accumulation.  Weight is pre-transposed in
    # HBM -> plain (M,K)x(K,N) contraction, no in-kernel transpose.
    partial = jnp.dot(x_ref[...], w_ref[...], preferred_element_type=jnp.float32)

    @pl.when(k == 0)
    def _():
        o_ref[...] = partial

    @pl.when(k != 0)
    def _():
        o_ref[...] += partial

    @pl.when(k == pl.num_programs(1) - 1)
    def _():
        h = o_ref[...] + b_ref[...]                 # bias broadcast (1, tH)
        # nn.LeakyReLU() default negative_slope = 0.01
        h = jnp.where(h >= 0, h, 0.01 * h)
        # nn.BatchNorm1d (training-mode batch stats, gamma=1, beta=0, eps=1e-5)
        # One-pass statistics (sum and sum-of-squares, single reduction each).
        s1 = jnp.sum(h, axis=0, keepdims=True)
        s2 = jnp.sum(h * h, axis=0, keepdims=True)
        mean = s1 * inv_batch
        var = jnp.maximum(s2 * inv_batch - mean * mean, 0.0)
        # nn.Dropout: identity (eval semantics).
        o_ref[...] = ((h - mean) * lax.rsqrt(var + 1e-5)).astype(o_ref.dtype)


def prepare_params(weight, bias, param_dtype=jnp.bfloat16):
    """One-time parameter preparation (do this at init, NOT per forward call):
    pad to tile multiples, transpose the weight to (F_pad, H_pad), and store
    it in bf16 to halve the dominant weight HBM stream."""
    H, F = weight.shape
    H_pad, tH = _pick_h_tile(H)
    F_pad, tK = _pick_k_tile(F)
    w = jnp.pad(weight, ((0, H_pad - H), (0, F_pad - F)))
    w_t = jnp.asarray(w.T, dtype=param_dtype)                    # (F_pad, H_pad)
    b2 = jnp.pad(bias, ((0, H_pad - H),)).reshape(1, H_pad).astype(jnp.float32)
    meta = dict(out_dim=H, th=tH, tk=tK)
    return w_t, b2, meta


@functools.partial(jax.jit, static_argnames=("out_dim", "th", "tk"))
def first_linear_layer(x, w_t, bias2, *, out_dim, th, tk):
    """x: (B, F) f32; w_t: (F_pad, H_pad) bf16/f32 (from prepare_params);
    bias2: (1, H_pad) f32.  Returns (hidden_rep (B, out_dim) f32, None)."""
    B, F = x.shape
    F_pad, H_pad = w_t.shape

    # Activation stream is tiny compared to the weight: pad + cast per call.
    if F_pad != F:
        x = jnp.pad(x, ((0, 0), (0, F_pad - F)))
    x = x.astype(w_t.dtype)     # cast to the MXU input dtype BEFORE pallas_call

    kernel = functools.partial(_first_linear_kernel, inv_batch=1.0 / B)

    itemsize = w_t.dtype.itemsize
    cost = pl.CostEstimate(
        flops=2 * B * F_pad * H_pad,
        transcendentals=H_pad,
        bytes_accessed=itemsize * (B * F_pad + F_pad * H_pad)
        + 4 * (B * H_pad + H_pad))

    out = pl.pallas_call(
        kernel,
        out_shape=jax.ShapeDtypeStruct((B, H_pad), jnp.float32),
        grid_spec=pltpu.PrefetchScalarGridSpec(
            num_scalar_prefetch=0,
            grid=(H_pad // th, F_pad // tk),
            in_specs=[
                pl.BlockSpec((B, tk), lambda i, k: (0, k)),    # x
                pl.BlockSpec((tk, th), lambda i, k: (k, i)),   # W^T (pre-transposed)
                pl.BlockSpec((1, th), lambda i, k: (0, i)),    # bias
            ],
            out_specs=pl.BlockSpec((B, th), lambda i, k: (0, i)),
        ),
        compiler_params=pltpu.CompilerParams(
            dimension_semantics=("parallel", "arbitrary")),
        cost_estimate=cost,
    )(x, w_t, bias2)

    if H_pad != out_dim:
        out = out[:, :out_dim]
    # sparsity is None -> all_sparsity_weights is None
    return out, None


def init_params(key, num_features, hidden_dim):
    """Deterministic init matching nn.init.kaiming_normal_(a=0.01,
    mode='fan_out', nonlinearity='leaky_relu') for weight shape (H, F)."""
    a = 0.01
    gain = (2.0 / (1.0 + a * a)) ** 0.5
    fan_out = hidden_dim                      # torch fan_out = weight.size(0)
    std = gain / (fan_out ** 0.5)
    wkey, _ = jax.random.split(key)
    weight = std * jax.random.normal(wkey, (hidden_dim, num_features),
                                     dtype=jnp.float32)
    bias = jnp.zeros((hidden_dim,), dtype=jnp.float32)
    return weight, bias


def _reference(x, weight, bias, compute_dtype):
    """Pure-JAX reference mirroring the kernel math."""
    h = jnp.dot(x.astype(compute_dtype), weight.T.astype(compute_dtype),
                preferred_element_type=jnp.float32)
    h = h + bias
    h = jnp.where(h >= 0, h, 0.01 * h)
    mean = h.mean(axis=0, keepdims=True)
    var = jnp.maximum((h * h).mean(axis=0, keepdims=True) - mean * mean, 0.0)
    return (h - mean) * lax.rsqrt(var + 1e-5)


if __name__ == "__main__":
    key = jax.random.PRNGKey(0)

    # Test 1: small shapes from the module's forward (padded to 256 internally).
    # Test 2: multi-tile grid (3 H tiles x 3 K tiles) exercising the in-place
    #         K-axis accumulation and the BN epilogue per H tile.
    test_shapes = [
        (8, 32, 32),        # (batch, num_features, hidden_dim)
        (64, 1536, 768),
    ]

    for batch_size, num_features, hidden_dim in test_shapes:
        key, xkey, pkey = jax.random.split(key, 3)
        x = jax.random.normal(xkey, (batch_size, num_features),
                              dtype=jnp.float32)
        weight, bias = init_params(pkey, num_features, hidden_dim)

        for param_dtype, tol in ((jnp.float32, 1e-4), (jnp.bfloat16, 1e-2)):
            w_t, b2, meta = prepare_params(weight, bias, param_dtype=param_dtype)
            hidden_rep, sparsity_weights = first_linear_layer(x, w_t, b2, **meta)
            jax.block_until_ready(hidden_rep)

            assert sparsity_weights is None
            assert hidden_rep.shape == (batch_size, hidden_dim)
            ref = _reference(x, weight, bias, param_dtype)
            err = float(jnp.max(jnp.abs(hidden_rep - ref)))
            assert jnp.allclose(hidden_rep, ref, atol=tol, rtol=tol), (
                f"mismatch at shapes {(batch_size, num_features, hidden_dim)} "
                f"dtype={param_dtype}: max abs err {err}")

    print("KERNEL_OK")
</pallas_src>

<mosaic_0001>
module attributes {stable_mosaic.version = 11 : i64} {
  func.func @_first_linear_kernel(%arg0: i32, %arg1: i32, %arg2: memref<8x256xf32, #tpu.memory_space<vmem>>, %arg3: memref<256x256xf32, #tpu.memory_space<vmem>>, %arg4: memref<1x256xf32, #tpu.memory_space<vmem>>, %arg5: memref<8x256xf32, #tpu.memory_space<vmem>>) attributes {dimension_semantics = [#tpu.dimension_semantics<parallel>, #tpu.dimension_semantics<arbitrary>], iteration_bounds = array<i64: 1, 1>, scalar_prefetch = 0 : i64, scratch_operands = 0 : i64, tpu.core_type = #tpu.core_type<tc>, window_params = [{transform_indices = @transform_0, window_bounds = array<i64: 8, 256>}, {transform_indices = @transform_1, window_bounds = array<i64: 256, 256>}, {transform_indices = @transform_2, window_bounds = array<i64: 1, 256>}, {transform_indices = @transform_3, window_bounds = array<i64: 8, 256>}]} {
    %c0 = arith.constant 0 : index
    %c0_0 = arith.constant 0 : index
    %0 = vector.load %arg2[%c0, %c0_0] : memref<8x256xf32, #tpu.memory_space<vmem>>, vector<8x256xf32>
    %c0_1 = arith.constant 0 : index
    %c0_2 = arith.constant 0 : index
    %1 = vector.load %arg3[%c0_1, %c0_2] : memref<256x256xf32, #tpu.memory_space<vmem>>, vector<256x256xf32>
    %cst = arith.constant dense<0.000000e+00> : vector<8x256xf32>
    %2 = tpu.matmul %0, %1, %cst {dimension_numbers = #tpu.dot_dimension_numbers<[1], [0], [0], [1], [0, 0, 1, 1], [], []>} : vector<8x256xf32>, vector<256x256xf32>, vector<8x256xf32> -> vector<8x256xf32>
    %c0_i32 = arith.constant 0 : i32
    %3 = arith.cmpi eq, %arg1, %c0_i32 : i32
    %4 = arith.extui %3 : i1 to i32
    %c0_i32_3 = arith.constant 0 : i32
    %5 = arith.cmpi ne, %4, %c0_i32_3 : i32
    scf.if %5 {
      %c0_8 = arith.constant 0 : index
      %c0_9 = arith.constant 0 : index
      %12 = vector.load %arg5[%c0_8, %c0_9] : memref<8x256xf32, #tpu.memory_space<vmem>>, vector<8x256xf32>
      tpu.vector_store %arg5[%c0_8, %c0_9], %2 {strides = array<i32>} : memref<8x256xf32, #tpu.memory_space<vmem>>, vector<8x256xf32>,
    } else {
    }
    %c0_i32_4 = arith.constant 0 : i32
    %6 = arith.cmpi ne, %arg1, %c0_i32_4 : i32
    %7 = arith.extui %6 : i1 to i32
    %c0_i32_5 = arith.constant 0 : i32
    %8 = arith.cmpi ne, %7, %c0_i32_5 : i32
    scf.if %8 {
      %c0_8 = arith.constant 0 : index
      %c0_9 = arith.constant 0 : index
      %12 = vector.load %arg5[%c0_8, %c0_9] : memref<8x256xf32, #tpu.memory_space<vmem>>, vector<8x256xf32>
      %13 = arith.addf %12, %2 : vector<8x256xf32>
      %c0_10 = arith.constant 0 : index
      %c0_11 = arith.constant 0 : index
      %14 = vector.load %arg5[%c0_10, %c0_11] : memref<8x256xf32, #tpu.memory_space<vmem>>, vector<8x256xf32>
      tpu.vector_store %arg5[%c0_10, %c0_11], %13 {strides = array<i32>} : memref<8x256xf32, #tpu.memory_space<vmem>>, vector<8x256xf32>,
    } else {
    }
    %c0_i32_6 = arith.constant 0 : i32
    %9 = arith.cmpi eq, %arg1, %c0_i32_6 : i32
    %10 = arith.extui %9 : i1 to i32
    %c0_i32_7 = arith.constant 0 : i32
    %11 = arith.cmpi ne, %10, %c0_i32_7 : i32
    scf.if %11 {
      %c0_8 = arith.constant 0 : index
      %c0_9 = arith.constant 0 : index
      %12 = vector.load %arg5[%c0_8, %c0_9] : memref<8x256xf32, #tpu.memory_space<vmem>>, vector<8x256xf32>
      %c0_10 = arith.constant 0 : index
      %c0_11 = arith.constant 0 : index
      %13 = vector.load %arg4[%c0_10, %c0_11] : memref<1x256xf32, #tpu.memory_space<vmem>>, vector<1x256xf32>
      %14 = vector.broadcast %13 : vector<1x256xf32> to vector<8x256xf32>
      %15 = arith.addf %12, %14 : vector<8x256xf32>
      %cst_12 = arith.constant 0.000000e+00 : f32
      %16 = vector.broadcast %cst_12 : f32 to vector<8x256xf32>
      %17 = arith.cmpf oge, %15, %16 : vector<8x256xf32>
      %cst_13 = arith.constant 0.00999999977 : f32
      %18 = vector.broadcast %cst_13 : f32 to vector<8x256xf32>
      %19 = arith.mulf %18, %15 : vector<8x256xf32>
      %20 = arith.select %17, %15, %19 : vector<8x256xi1>, vector<8x256xf32>
      %cst_14 = arith.constant dense<0.000000e+00> : vector<256xf32>
      %21 = vector.multi_reduction <add>, %20, %cst_14 [0] : vector<8x256xf32> to vector<256xf32>
      %22 = vector.shape_cast %21 : vector<256xf32> to vector<1x256xf32>
      %23 = arith.mulf %20, %20 : vector<8x256xf32>
      %cst_15 = arith.constant dense<0.000000e+00> : vector<256xf32>
      %24 = vector.multi_reduction <add>, %23, %cst_15 [0] : vector<8x256xf32> to vector<256xf32>
      %25 = vector.shape_cast %24 : vector<256xf32> to vector<1x256xf32>
      %cst_16 = arith.constant 1.250000e-01 : f32
      %26 = vector.broadcast %cst_16 : f32 to vector<1x256xf32>
      %27 = arith.mulf %22, %26 : vector<1x256xf32>
      %cst_17 = arith.constant 1.250000e-01 : f32
      %28 = vector.broadcast %cst_17 : f32 to vector<1x256xf32>
      %29 = arith.mulf %25, %28 : vector<1x256xf32>
      %30 = arith.mulf %27, %27 : vector<1x256xf32>
      %31 = arith.subf %29, %30 : vector<1x256xf32>
      %cst_18 = arith.constant 0.000000e+00 : f32
      %32 = vector.broadcast %cst_18 : f32 to vector<1x256xf32>
      %33 = arith.maximumf %31, %32 : vector<1x256xf32>
      %34 = vector.broadcast %27 : vector<1x256xf32> to vector<8x256xf32>
      %35 = arith.subf %20, %34 : vector<8x256xf32>
      %cst_19 = arith.constant 9.99999974E-6 : f32
      %36 = vector.broadcast %cst_19 : f32 to vector<1x256xf32>
      %37 = arith.addf %33, %36 : vector<1x256xf32>
      %38 = math.rsqrt %37 : vector<1x256xf32>
      %39 = vector.broadcast %38 : vector<1x256xf32> to vector<8x256xf32>
      %40 = arith.mulf %35, %39 : vector<8x256xf32>
      %c0_20 = arith.constant 0 : index
      %c0_21 = arith.constant 0 : index
      %41 = vector.load %arg5[%c0_20, %c0_21] : memref<8x256xf32, #tpu.memory_space<vmem>>, vector<8x256xf32>
      tpu.vector_store %arg5[%c0_20, %c0_21], %40 {strides = array<i32>} : memref<8x256xf32, #tpu.memory_space<vmem>>, vector<8x256xf32>,
    } else {
    }
    return
  }
  func.func @transform_0(%arg0: i32, %arg1: i32) -> (i32, i32) {
    %c0_i32 = arith.constant 0 : i32
    %c0_i32_0 = arith.constant 0 : i32
    return %c0_i32, %arg1 : i32, i32
  }
  func.func @transform_1(%arg0: i32, %arg1: i32) -> (i32, i32) {
    %c0_i32 = arith.constant 0 : i32
    return %arg1, %arg0 : i32, i32
  }
  func.func @transform_2(%arg0: i32, %arg1: i32) -> (i32, i32) {
    %c0_i32 = arith.constant 0 : i32
    %c0_i32_0 = arith.constant 0 : i32
    return %c0_i32, %arg0 : i32, i32
  }
  func.func @transform_3(%arg0: i32, %arg1: i32) -> (i32, i32) {
    %c0_i32 = arith.constant 0 : i32
    %c0_i32_0 = arith.constant 0 : i32
    return %c0_i32, %arg0 : i32, i32
  }
}

</mosaic_0001>

<llo_original>
// kernel: first_linear_layer.1
$region0: #{first_linear_layer.1}
  #allocation0 [shape = 'u32[]', space=smem, size = 0x4, offset = 0x4, fixed_abs, tag = 'smem constant byte address 0x4 - core index']
  #allocation1 [shape = 'u32[144,128]{1,0:T(1,128)}', space=vmem, size = 0x12000, scoped, tag = 'internal scratch']
  %s0 = inlined_call_operand.vmem [shape: f32[8,256], index: 0, kind: input, shape index: {}]
  %s1 = inlined_call_operand.hbm [shape: f32[256,256], index: 1, kind: input, shape index: {}]
  %s2 = inlined_call_operand.vmem [shape: f32[1,256], index: 2, kind: input, shape index: {}]
  %s3 = inlined_call_operand.vmem [shape: f32[8,256], index: 3, kind: output, shape index: {}]
  %s4 = sld [smem:[#allocation0]]
  $region38: #{first_linear_layer.1} parent=0
    _
  %s6 = ssub.s32 1, %s4
  %s7 = scalar_select 0, %s6, %s4
  $region1: #{first_linear_layer.1} parent=0
    #allocation2 [shape = 'u8[262144]{0}', space=vmem, size = 0x40000, scoped, tag = 'input window, operand 1, single buffered']
    #allocation3 [shape = 's32[1]{0}', space=sflag, size = 0x4, scoped, tag = 'scoped memory for first_linear_layer.1']
    %8 = vsyncpa [#allocation3], 0
    // Predicated region
    $region2: #{first_linear_layer.1} parent=1 // pred_check
      _
    $region3: #{first_linear_layer.1} parent=1 // pred_check_branch
      %10 = sbr.rel (0) target = $region5
    $region4: #{first_linear_layer.1} parent=1 // pred_region
      _
    $region5: #{first_linear_layer.1} parent=1 // pred_fallthru
      _
    // Predicated region
    $region6: #{first_linear_layer.1} parent=1 // pred_check
      _
    $region7: #{first_linear_layer.1} parent=1 // pred_check_branch
      %12 = sbr.rel (0) target = $region9
    $region8: #{first_linear_layer.1} parent=1 // pred_region
      %s14 = ssub.s32 8192, 8192
      %15 = vsyncadd [#allocation3], %s14
      %s16 = sshll.u32 [#allocation2], 4
      %s17 = int_to_ptr.vmem [resolvable:$true] %s16
      %22 = dma.hbm_to_vmem [thread:$0]  %s1, 8192, %s17, [#allocation3], 256, 256, 16
    $region9: #{first_linear_layer.1} parent=1 // pred_fallthru
      _
    // Predicated region
    $region10: #{first_linear_layer.1} parent=1 // pred_check
      _
    $region11: #{first_linear_layer.1} parent=1 // pred_check_branch
      %24 = sbr.rel (0) target = $region13
    $region12: #{first_linear_layer.1} parent=1 // pred_region
      _
    $region13: #{first_linear_layer.1} parent=1 // pred_fallthru
      _
    // Predicated region
    $region14: #{first_linear_layer.1} parent=1 // pred_check
      _
    $region15: #{first_linear_layer.1} parent=1 // pred_check_branch
      %26 = sbr.rel (0) target = $region17
    $region16: #{first_linear_layer.1} parent=1 // pred_region
      %27 = dma.done [#allocation3], 8192
    $region17: #{first_linear_layer.1} parent=1 // pred_fallthru
      _
    %v28 = vld [vmem:[%s0] sm:$0xff]
    %v29 = vld [vmem:[%s0 + $0x8] sm:$0xff]
    %v30 = vld [vmem:[#allocation2] sm:$0xff]
    %v31 = vld [vmem:[#allocation2 + $0x8] sm:$0xff]
    %v32 = vld [vmem:[#allocation2 + $0x10] sm:$0xff]
    %v33 = vld [vmem:[#allocation2 + $0x18] sm:$0xff]
    %v34 = vld [vmem:[#allocation2 + $0x20] sm:$0xff]
    %v35 = vld [vmem:[#allocation2 + $0x28] sm:$0xff]
    %v36 = vld [vmem:[#allocation2 + $0x30] sm:$0xff]
    %v37 = vld [vmem:[#allocation2 + $0x38] sm:$0xff]
    %v38 = vld [vmem:[#allocation2 + $0x40] sm:$0xff]
    %v39 = vld [vmem:[#allocation2 + $0x48] sm:$0xff]
    %v40 = vld [vmem:[#allocation2 + $0x50] sm:$0xff]
    %v41 = vld [vmem:[#allocation2 + $0x58] sm:$0xff]
    %v42 = vld [vmem:[#allocation2 + $0x60] sm:$0xff]
    %v43 = vld [vmem:[#allocation2 + $0x68] sm:$0xff]
    %v44 = vld [vmem:[#allocation2 + $0x70] sm:$0xff]
    %v45 = vld [vmem:[#allocation2 + $0x78] sm:$0xff]
    %v46 = vld [vmem:[#allocation2 + $0x80] sm:$0xff]
    %v47 = vld [vmem:[#allocation2 + $0x88] sm:$0xff]
    %v48 = vld [vmem:[#allocation2 + $0x90] sm:$0xff]
    %v49 = vld [vmem:[#allocation2 + $0x98] sm:$0xff]
    %v50 = vld [vmem:[#allocation2 + $0xa0] sm:$0xff]
    %v51 = vld [vmem:[#allocation2 + $0xa8] sm:$0xff]
    %v52 = vld [vmem:[#allocation2 + $0xb0] sm:$0xff]
    %v53 = vld [vmem:[#allocation2 + $0xb8] sm:$0xff]
    %v54 = vld [vmem:[#allocation2 + $0xc0] sm:$0xff]
    %v55 = vld [vmem:[#allocation2 + $0xc8] sm:$0xff]
    %v56 = vld [vmem:[#allocation2 + $0xd0] sm:$0xff]
    %v57 = vld [vmem:[#allocation2 + $0xd8] sm:$0xff]
    %v58 = vld [vmem:[#allocation2 + $0xe0] sm:$0xff]
    %v59 = vld [vmem:[#allocation2 + $0xe8] sm:$0xff]
    %v60 = vld [vmem:[#allocation2 + $0xf0] sm:$0xff]
    %v61 = vld [vmem:[#allocation2 + $0xf8] sm:$0xff]
    %v62 = vld [vmem:[#allocation2 + $0x100] sm:$0xff]
    %v63 = vld [vmem:[#allocation2 + $0x108] sm:$0xff]
    %v64 = vld [vmem:[#allocation2 + $0x110] sm:$0xff]
    %v65 = vld [vmem:[#allocation2 + $0x118] sm:$0xff]
    %v66 = vld [vmem:[#allocation2 + $0x120] sm:$0xff]
    %v67 = vld [vmem:[#allocation2 + $0x128] sm:$0xff]
    %v68 = vld [vmem:[#allocation2 + $0x130] sm:$0xff]
    %v69 = vld [vmem:[#allocation2 + $0x138] sm:$0xff]
    %v70 = vld [vmem:[#allocation2 + $0x140] sm:$0xff]
    %v71 = vld [vmem:[#allocation2 + $0x148] sm:$0xff]
    %v72 = vld [vmem:[#allocation2 + $0x150] sm:$0xff]
    %v73 = vld [vmem:[#allocation2 + $0x158] sm:$0xff]
    %v74 = vld [vmem:[#allocation2 + $0x160] sm:$0xff]
    %v75 = vld [vmem:[#allocation2 + $0x168] sm:$0xff]
    %v76 = vld [vmem:[#allocation2 + $0x170] sm:$0xff]
    %v77 = vld [vmem:[#allocation2 + $0x178] sm:$0xff]
    %v78 = vld [vmem:[#allocation2 + $0x180] sm:$0xff]
    %v79 = vld [vmem:[#allocation2 + $0x188] sm:$0xff]
    %v80 = vld [vmem:[#allocation2 + $0x190] sm:$0xff]
    %v81 = vld [vmem:[#allocation2 + $0x198] sm:$0xff]
    %v82 = vld [vmem:[#allocation2 + $0x1a0] sm:$0xff]
    %v83 = vld [vmem:[#allocation2 + $0x1a8] sm:$0xff]
    %v84 = vld [vmem:[#allocation2 + $0x1b0] sm:$0xff]
    %v85 = vld [vmem:[#allocation2 + $0x1b8] sm:$0xff]
    %v86 = vld [vmem:[#allocation2 + $0x1c0] sm:$0xff]
    %v87 = vld [vmem:[#allocation2 + $0x1c8] sm:$0xff]
    %v88 = vld [vmem:[#allocation2 + $0x1d0] sm:$0xff]
    %v89 = vld [vmem:[#allocation2 + $0x1d8] sm:$0xff]
    %v90 = vld [vmem:[#allocation2 + $0x1e0] sm:$0xff]
    %v91 = vld [vmem:[#allocation2 + $0x1e8] sm:$0xff]
    %v92 = vld [vmem:[#allocation2 + $0x1f0] sm:$0xff]
    %v93 = vld [vmem:[#allocation2 + $0x1f8] sm:$0xff]
    %94 = vmatprep.subr.mxu0 %v31
    %95 = vmatpush1.msra.mxu0 %v30
    %96 = vmatprep.subr.mxu0 %v33
    %97 = vmatpush1.msra.mxu0 %v32
    %98 = vmatprep.subr.mxu0 %v35
    %99 = vmatpush1.msra.mxu0 %v34
    %100 = vmatprep.subr.mxu0 %v37
    %101 = vmatpush1.msra.mxu0 %v36
    %102 = vmatprep.subr.mxu0 %v39
    %103 = vmatpush1.msra.mxu0 %v38
    %104 = vmatprep.subr.mxu0 %v41
    %105 = vmatpush1.msra.mxu0 %v40
    %106 = vmatprep.subr.mxu0 %v43
    %107 = vmatpush1.msra.mxu0 %v42
    %108 = vmatprep.subr.mxu0 %v45
    %109 = vmatpush1.msra.mxu0 %v44
    %110 = vmatprep.subr.mxu0 %v47
    %111 = vmatpush1.msra.mxu0 %v46
    %112 = vmatprep.subr.mxu0 %v49
    %113 = vmatpush1.msra.mxu0 %v48
    %114 = vmatprep.subr.mxu0 %v51
    %115 = vmatpush1.msra.mxu0 %v50
    %116 = vmatprep.subr.mxu0 %v53
    %117 = vmatpush1.msra.mxu0 %v52
    %118 = vmatprep.subr.mxu0 %v55
    %119 = vmatpush1.msra.mxu0 %v54
    %120 = vmatprep.subr.mxu0 %v57
    %121 = vmatpush1.msra.mxu0 %v56
    %122 = vmatprep.subr.mxu0 %v59
    %123 = vmatpush1.msra.mxu0 %v58
    %124 = vmatprep.subr.mxu0 %v61
    %125 = vmatpush1.msra.mxu0 %v60
    %126 = vmatprep.subr.mxu0 %v63
    %127 = vmatpush1.msra.mxu0 %v62
    %128 = vmatprep.subr.mxu0 %v65
    %129 = vmatpush1.msra.mxu0 %v64
    %130 = vmatprep.subr.mxu0 %v67
    %131 = vmatpush1.msra.mxu0 %v66
    %132 = vmatprep.subr.mxu0 %v69
    %133 = vmatpush1.msra.mxu0 %v68
    %134 = vmatprep.subr.mxu0 %v71
    %135 = vmatpush1.msra.mxu0 %v70
    %136 = vmatprep.subr.mxu0 %v73
    %137 = vmatpush1.msra.mxu0 %v72
    %138 = vmatprep.subr.mxu0 %v75
    %139 = vmatpush1.msra.mxu0 %v74
    %140 = vmatprep.subr.mxu0 %v77
    %141 = vmatpush1.msra.mxu0 %v76
    %142 = vmatprep.subr.mxu0 %v79
    %143 = vmatpush1.msra.mxu0 %v78
    %144 = vmatprep.subr.mxu0 %v81
    %145 = vmatpush1.msra.mxu0 %v80
    %146 = vmatprep.subr.mxu0 %v83
    %147 = vmatpush1.msra.mxu0 %v82
    %148 = vmatprep.subr.mxu0 %v85
    %149 = vmatpush1.msra.mxu0 %v84
    %150 = vmatprep.subr.mxu0 %v87
    %151 = vmatpush1.msra.mxu0 %v86
    %152 = vmatprep.subr.mxu0 %v89
    %153 = vmatpush1.msra.mxu0 %v88
    %154 = vmatprep.subr.mxu0 %v91
    %155 = vmatpush1.msra.mxu0 %v90
    %156 = vmatprep.subr.mxu0 %v93
    %157 = vmatpush1.msra.mxu0 %v92
    %158 = vmatprep.mubr.f32.mxu0 %v29
    %159 = vmatmul.mubr.f32.gmra.mrb[0].mxu0 %v28
    %v160 = vpop.f32.mrb[0].mxu0
    %v161 = vadd.f32 0.0, %v160
    %v162 = vpop.f32.mrb[0].mxu0
    %v163 = vadd.f32 0.0, %v162
    %164 = vdwg.mxu0
    %p165 = scmp.eq.s32.totalorder 0, 0
    // Predicated region
    $region18: #{first_linear_layer.1} parent=1 // pred_check
      %p166 = pneg %p165
    $region19: #{first_linear_layer.1} parent=1 // pred_check_branch
      %168 = sbr.rel (%p166) target = $region21
    $region20: #{first_linear_layer.1} parent=1 // pred_region
      %169 = vst [vmem:[%s3] sm:$0xff] %v161
      %170 = vst [vmem:[%s3 + $0x8] sm:$0xff] %v163
    $region21: #{first_linear_layer.1} parent=1 // pred_fallthru
      _
    %p171 = scmp.ne.s32.totalorder 0, 0
    // Predicated region
    $region22: #{first_linear_layer.1} parent=1 // pred_check
      %p172 = pneg %p171
    $region23: #{first_linear_layer.1} parent=1 // pred_check_branch
      %174 = sbr.rel (%p172) target = $region25
    $region24: #{first_linear_layer.1} parent=1 // pred_region
      %v175 = vld [vmem:[%s3] sm:$0xff]
      %v176 = vld [vmem:[%s3 + $0x8] sm:$0xff]
      %v177 = vadd.f32 %v175, %v161
      %v178 = vadd.f32 %v176, %v163
      %179 = vst [vmem:[%s3] sm:$0xff] %v177
      %180 = vst [vmem:[%s3 + $0x8] sm:$0xff] %v178
    $region25: #{first_linear_layer.1} parent=1 // pred_fallthru
      _
    // Predicated region
    $region26: #{first_linear_layer.1} parent=1 // pred_check
      %p181 = pneg %p165
    $region27: #{first_linear_layer.1} parent=1 // pred_check_branch
      %183 = sbr.rel (%p181) target = $region29
    $region28: #{first_linear_layer.1} parent=1 // pred_region
      %v184 = vld [vmem:[%s3] sm:$0xff]
      %v185 = vld [vmem:[%s3 + $0x8] sm:$0xff]
      %v186 = vld [vmem:[%s2] sm:$0x3]
      %v188 = vlaneseq
      %v189 = vshrl.u32 %v188, 7
      %v190 = vsub.s32 0, %v189
      %v191 = vrot.slane %v186, %v190
      %v192 = vlaneseq
      %v193 = vshrl.u32 %v192, 7
      %v194 = vsub.s32 1, %v193
      %v195 = vrot.slane %v186, %v194
      %v198 = vadd.f32 %v184, %v191
      %v199 = vadd.f32 %v185, %v195
      %vm200 = vcmp.ge.f32.partialorder %v198, 0.0
      %vm201 = vcmp.ge.f32.partialorder %v199, 0.0
      %v202 = vmul.f32 %v198, 0.01
      %v203 = vmul.f32 %v199, 0.01
      %v204 = vsel %vm200, %v198, %v202
      %v205 = vsel %vm201, %v199, %v203
      %v206 = vrot.slane %v204, 4
      %v207 = vadd.f32 %v204, %v206
      %v208 = vrot.slane %v207, 2
      %v209 = vadd.f32 %v207, %v208
      %v210 = vrot.slane %v209, 1
      %v211 = vadd.f32 %v209, %v210
      %v212 = vrot.slane %v205, 4
      %v213 = vadd.f32 %v205, %v212
      %v214 = vrot.slane %v213, 2
      %v215 = vadd.f32 %v213, %v214
      %v216 = vrot.slane %v215, 1
      %v217 = vadd.f32 %v215, %v216
      %v218 = vmul.f32 %v204, %v204
      %v219 = vmul.f32 %v205, %v205
      %v220 = vrot.slane %v218, 4
      %v221 = vadd.f32 %v218, %v220
      %v222 = vrot.slane %v221, 2
      %v223 = vadd.f32 %v221, %v222
      %v224 = vrot.slane %v223, 1
      %v225 = vadd.f32 %v223, %v224
      %v226 = vrot.slane %v219, 4
      %v227 = vadd.f32 %v219, %v226
      %v228 = vrot.slane %v227, 2
      %v229 = vadd.f32 %v227, %v228
      %v230 = vrot.slane %v229, 1
      %v231 = vadd.f32 %v229, %v230
      %v232 = vmul.f32 %v211, 0.125
      %v233 = vmul.f32 %v217, 0.125
      %v234 = vmul.f32 %v225, 0.125
      %v235 = vmul.f32 %v231, 0.125
      %v236 = vmul.f32 %v232, %v232
      %v237 = vmul.f32 %v233, %v233
      %v238 = vsub.f32 %v234, %v236
      %v239 = vsub.f32 %v235, %v237
      %v240 = vmax.f32 %v238, 0.0
      %v241 = vmax.f32 %v239, 0.0
      %v242 = vsub.f32 %v204, %v232
      %v243 = vsub.f32 %v205, %v233
      %v244 = vadd.f32 %v240, 1e-05
      %v245 = vadd.f32 %v241, 1e-05
      %v246 = vrsqrt.pop %v244
      %v247 = vrsqrt.pop %v245
      %v248 = vmul.f32 %v242, %v246
      %v249 = vmul.f32 %v243, %v247
      %250 = vst [vmem:[%s3] sm:$0xff] %v248
      %251 = vst [vmem:[%s3 + $0x8] sm:$0xff] %v249
    $region29: #{first_linear_layer.1} parent=1 // pred_fallthru
      _
    // Predicated region
    $region30: #{first_linear_layer.1} parent=1 // pred_check
      _
    $region31: #{first_linear_layer.1} parent=1 // pred_check_branch
      %253 = sbr.rel (0) target = $region33
    $region32: #{first_linear_layer.1} parent=1 // pred_region
      _
    $region33: #{first_linear_layer.1} parent=1 // pred_fallthru
      _
    // Predicated region
    $region34: #{first_linear_layer.1} parent=1 // pred_check
      _
    $region35: #{first_linear_layer.1} parent=1 // pred_check_branch
      %255 = sbr.rel (0) target = $region37
    $region36: #{first_linear_layer.1} parent=1 // pred_region
      _
    $region37: #{first_linear_layer.1} parent=1 // pred_fallthru
      _
    %256 = vsyncpa [#allocation3], 1

</llo_original>
